<compile_context>
chip_gen: v7x
topology: tpu7x:2x2x1
jax: 0.10.0
libtpu: 0.0.40
codegen_flags: <defaults>
</compile_context>

<pallas_src>
import functools

import jax
import jax.numpy as jnp
from jax.experimental import pallas as pl
from jax.experimental.pallas import tpu as pltpu

_VMEM_LIMIT = 32 * 1024 * 1024   # scoped-VMEM cap that is safe on v5e/v6e/v7x
_NEG_INF = jnp.float32(-1e30)


def _round_up(x, m):
    return ((x + m - 1) // m) * m


def _choose_tile(n, tile_n, vp):
    """Row-tile size: multiple of 8, large enough to amortize per-step
    overhead, small enough for the scoped-VMEM budget, and >=2 grid steps
    when the problem allows it (v7x megacore)."""
    n8 = _round_up(n, 8)
    tn = _round_up(max(tile_n, 512), 8)          # fat tiles amortize ~0.35us/step
    if tn >= n8:
        # Whole problem fits in one tile: split into two so the "parallel"
        # grid axis can shard across both TensorCores on v7x.
        tn = _round_up(pl.cdiv(n, 2), 8) if n > 8 else 8

    # ~5x the Vp-wide logits tile (matmul result, exp temp, one-hot,
    # double-buffered output) + resident table, with headroom.
    def budget(t):
        return 5 * t * vp * 4 + 2 * vp * vp * 4 + (64 << 10)

    while budget(tn) > _VMEM_LIMIT and tn > 512:
        tn = _round_up(tn // 2, 8)
    return tn


def _bigram_kernel(tok_ref, table_ref, *out_refs, with_logits, v_valid):
    if with_logits:
        logits_ref, nll_ref = out_refs
    else:
        (nll_ref,) = out_refs

    tok = tok_ref[...]                           # (tN, 2) int32
    idx = tok[:, 0:1]                            # (tN, 1)
    tgt = tok[:, 1:2]                            # (tN, 1)
    table = table_ref[...]                       # (Vp, Vp) f32, pad cols = -1e30

    vp = table.shape[1]
    # Single-row lane index, broadcast against the (tN, 1) token columns.
    col = jax.lax.broadcasted_iota(jnp.int32, (1, vp), 1)          # (1, Vp)

    # --- Embedding lookup: one-hot(idx) @ table on the MXU (lane-dense) ----
    onehot = (col == idx).astype(table.dtype)                      # (tN, Vp)
    logits = jnp.dot(onehot, table, preferred_element_type=jnp.float32)

    if with_logits:
        logits_ref[...] = logits[:, :v_valid]                      # (tN, V)

    # --- Fused cross-entropy epilogue: nll = lse - logit[target] -----------
    # Padded vocab columns already carry -1e30 (from the table pad), so no
    # extra mask is needed: they vanish in exp() and never win the max.
    m = jnp.max(logits, axis=-1, keepdims=True)                    # (tN, 1)
    sumexp = jnp.sum(jnp.exp(logits - m), axis=-1, keepdims=True)  # (tN, 1)
    lse = m + jnp.log(sumexp)                                      # (tN, 1)
    tgt_logit = jnp.sum(jnp.where(col == tgt, logits, 0.0),
                        axis=-1, keepdims=True)                    # (tN, 1)
    nll_ref[...] = lse - tgt_logit


def bigram_forward(idx, targets, table, *, tile_n=4096, return_logits=True):
    """idx, targets: (B, T) int token ids; table: (V, V) float embedding.

    Returns (logits (B*T, V) float32, loss scalar) like the PyTorch forward
    when targets is provided, or just the scalar loss if return_logits=False.
    """
    B, T = idx.shape
    V = table.shape[0]
    N = B * T
    Vp = _round_up(V, 128)                       # lane-dense vocab dim

    tN = _choose_tile(N, tile_n, Vp)
    G = pl.cdiv(N, tN)
    N_pad = G * tN

    tokens = jnp.stack(
        [idx.reshape(N).astype(jnp.int32), targets.reshape(N).astype(jnp.int32)],
        axis=-1)                                                   # (N, 2)
    if N_pad != N:
        tokens = jnp.pad(tokens, ((0, N_pad - N), (0, 0)))         # idx/tgt pad = 0

    # Pad the table to (Vp, Vp); padded columns get -1e30 so the LSE ignores
    # them with no in-kernel mask.  Padded rows are never selected (idx < V).
    table_p = jnp.pad(table.astype(jnp.float32),
                      ((0, Vp - V), (0, Vp - V)),
                      constant_values=_NEG_INF)

    kernel = functools.partial(_bigram_kernel,
                               with_logits=return_logits, v_valid=V)

    out_shape = []
    out_specs = []
    if return_logits:
        out_shape.append(jax.ShapeDtypeStruct((N, V), jnp.float32))
        out_specs.append(pl.BlockSpec((tN, V), lambda i: (i, 0)))
    out_shape.append(jax.ShapeDtypeStruct((N, 1), jnp.float32))
    out_specs.append(pl.BlockSpec((tN, 1), lambda i: (i, 0)))

    cost = pl.CostEstimate(
        flops=int(2 * N_pad * Vp * Vp),                  # one-hot @ table
        transcendentals=int(N_pad * (Vp + 1)),           # exp per elem + log per row
        bytes_accessed=int((N * V * 4 if return_logits else 0)   # logits out
                           + Vp * Vp * 4                          # table in
                           + N_pad * (8 + 4)),                    # tokens in, nll out
    )

    outs = pl.pallas_call(
        kernel,
        out_shape=tuple(out_shape),
        grid=(G,),
        in_specs=[
            pl.BlockSpec((tN, 2), lambda i: (i, 0)),     # merged idx/target rows
            pl.BlockSpec((Vp, Vp), lambda i: (0, 0)),    # table resident
        ],
        out_specs=tuple(out_specs),
        compiler_params=pltpu.CompilerParams(
            dimension_semantics=("parallel",),           # shard tiles across TCs (v7x)
            vmem_limit_bytes=_VMEM_LIMIT,
        ),
        cost_estimate=cost,
    )(tokens, table_p)

    if return_logits:
        logits, nll = outs
    else:
        (nll,) = outs
        logits = None

    loss = jnp.sum(nll) / jnp.float32(N)
    return (logits, loss) if return_logits else loss


def _reference(idx, targets, table):
    N = idx.size
    logits = table[idx.reshape(-1)]
    lse = jax.scipy.special.logsumexp(logits, axis=-1, keepdims=True)
    loss = -jnp.mean((logits - lse)[jnp.arange(N), targets.reshape(-1)])
    return logits, loss


if __name__ == "__main__":
    key = jax.random.PRNGKey(0)
    k_table, k_idx, k_tgt = jax.random.split(key, 3)

    vocab_size = 65   # char-level Shakespeare vocab
    B, T = 2, 8
    N = B * T

    # nn.Embedding default init ~ N(0, 1)
    table = jax.random.normal(k_table, (vocab_size, vocab_size), dtype=jnp.float32)
    idx = jax.random.randint(k_idx, (B, T), 0, vocab_size, dtype=jnp.int32)
    targets = jax.random.randint(k_tgt, (B, T), 0, vocab_size, dtype=jnp.int32)

    ref_logits, ref_loss = _reference(idx, targets, table)

    # Default path: logits + loss.
    logits, loss = bigram_forward(idx, targets, table)
    jax.block_until_ready((logits, loss))
    assert logits.shape == (N, vocab_size)
    assert jnp.allclose(logits, ref_logits, atol=1e-5), "logits mismatch"
    assert jnp.allclose(loss, ref_loss, atol=1e-5), "loss mismatch"

    # Loss-only fast path (skips the logits HBM writeback entirely).
    loss_only = bigram_forward(idx, targets, table, return_logits=False)
    jax.block_until_ready(loss_only)
    assert jnp.allclose(loss_only, ref_loss, atol=1e-5), "loss-only mismatch"

    # Larger multi-tile configuration (exercises the row grid).
    B2, T2 = 4, 64
    idx2 = jax.random.randint(jax.random.PRNGKey(1), (B2, T2), 0, vocab_size,
                              dtype=jnp.int32)
    tgt2 = jax.random.randint(jax.random.PRNGKey(2), (B2, T2), 0, vocab_size,
                              dtype=jnp.int32)
    ref_logits2, ref_loss2 = _reference(idx2, tgt2, table)
    logits2, loss2 = bigram_forward(idx2, tgt2, table, tile_n=512)
    jax.block_until_ready((logits2, loss2))
    assert logits2.shape == (B2 * T2, vocab_size)
    assert jnp.allclose(logits2, ref_logits2, atol=1e-5), "logits mismatch (large)"
    assert jnp.allclose(loss2, ref_loss2, atol=1e-5), "loss mismatch (large)"

    print("KERNEL_OK")
</pallas_src>

<mosaic_0001>
module attributes {stable_mosaic.version = 11 : i64} {
  func.func @_bigram_kernel(%arg0: i32, %arg1: memref<8x2xi32, #tpu.memory_space<vmem>>, %arg2: memref<128x128xf32, #tpu.memory_space<vmem>>, %arg3: memref<8x65xf32, #tpu.memory_space<vmem>>, %arg4: memref<8x1xf32, #tpu.memory_space<vmem>>) attributes {dimension_semantics = [#tpu.dimension_semantics<parallel>], iteration_bounds = array<i64: 2>, scalar_prefetch = 0 : i64, scratch_operands = 0 : i64, tpu.core_type = #tpu.core_type<tc>, window_params = [{transform_indices = @transform_0, window_bounds = array<i64: 8, 2>}, {pipeline_mode = #tpu.pipeline_mode<synchronous>, transform_indices = @transform_1, window_bounds = array<i64: 128, 128>}, {transform_indices = @transform_2, window_bounds = array<i64: 8, 65>}, {transform_indices = @transform_3, window_bounds = array<i64: 8, 1>}]} {
    %c0 = arith.constant 0 : index
    %c0_0 = arith.constant 0 : index
    %0 = vector.load %arg1[%c0, %c0_0] : memref<8x2xi32, #tpu.memory_space<vmem>>, vector<8x2xi32>
    %1 = vector.extract_strided_slice %0 {offsets = [0, 0], sizes = [8, 1], strides = [1, 1]} : vector<8x2xi32> to vector<8x1xi32>
    %2 = vector.extract_strided_slice %0 {offsets = [0, 1], sizes = [8, 1], strides = [1, 1]} : vector<8x2xi32> to vector<8x1xi32>
    %c0_1 = arith.constant 0 : index
    %c0_2 = arith.constant 0 : index
    %3 = vector.load %arg2[%c0_1, %c0_2] : memref<128x128xf32, #tpu.memory_space<vmem>>, vector<128x128xf32>
    %4 = tpu.iota {dimensions = array<i32: 1>} : vector<1x128xi32>
    %5 = vector.broadcast %4 : vector<1x128xi32> to vector<8x128xi32>
    %6 = vector.broadcast %1 : vector<8x1xi32> to vector<8x128xi32>
    %7 = arith.cmpi eq, %5, %6 : vector<8x128xi32>
    %8 = arith.extui %7 : vector<8x128xi1> to vector<8x128xi32>
    %9 = arith.sitofp %8 : vector<8x128xi32> to vector<8x128xf32>
    %cst = arith.constant dense<0.000000e+00> : vector<8x128xf32>
    %10 = tpu.matmul %9, %3, %cst {dimension_numbers = #tpu.dot_dimension_numbers<[1], [0], [0], [1], [0, 0, 1, 1], [], []>} : vector<8x128xf32>, vector<128x128xf32>, vector<8x128xf32> -> vector<8x128xf32>
    %11 = vector.extract_strided_slice %10 {offsets = [0, 0], sizes = [8, 65], strides = [1, 1]} : vector<8x128xf32> to vector<8x65xf32>
    %c0_3 = arith.constant 0 : index
    %c0_4 = arith.constant 0 : index
    %12 = vector.load %arg3[%c0_3, %c0_4] : memref<8x65xf32, #tpu.memory_space<vmem>>, vector<8x65xf32>
    tpu.vector_store %arg3[%c0_3, %c0_4], %11 {strides = array<i32>} : memref<8x65xf32, #tpu.memory_space<vmem>>, vector<8x65xf32>,
    %cst_5 = arith.constant dense<0xFF800000> : vector<8xf32>
    %13 = vector.multi_reduction <maximumf>, %10, %cst_5 [1] : vector<8x128xf32> to vector<8xf32>
    %14 = vector.shape_cast %13 : vector<8xf32> to vector<8x1xf32>
    %15 = vector.broadcast %14 : vector<8x1xf32> to vector<8x128xf32>
    %16 = arith.subf %10, %15 : vector<8x128xf32>
    %17 = math.exp %16 : vector<8x128xf32>
    %cst_6 = arith.constant dense<0.000000e+00> : vector<8xf32>
    %18 = vector.multi_reduction <add>, %17, %cst_6 [1] : vector<8x128xf32> to vector<8xf32>
    %19 = vector.shape_cast %18 : vector<8xf32> to vector<8x1xf32>
    %20 = math.log %19 : vector<8x1xf32>
    %21 = arith.addf %14, %20 : vector<8x1xf32>
    %22 = vector.broadcast %4 : vector<1x128xi32> to vector<8x128xi32>
    %23 = vector.broadcast %2 : vector<8x1xi32> to vector<8x128xi32>
    %24 = arith.cmpi eq, %22, %23 : vector<8x128xi32>
    %cst_7 = arith.constant 0.000000e+00 : f32
    %25 = vector.broadcast %cst_7 : f32 to vector<8x128xf32>
    %26 = arith.select %24, %10, %25 : vector<8x128xi1>, vector<8x128xf32>
    %cst_8 = arith.constant dense<0.000000e+00> : vector<8xf32>
    %27 = vector.multi_reduction <add>, %26, %cst_8 [1] : vector<8x128xf32> to vector<8xf32>
    %28 = vector.shape_cast %27 : vector<8xf32> to vector<8x1xf32>
    %29 = arith.subf %21, %28 : vector<8x1xf32>
    %c0_9 = arith.constant 0 : index
    %c0_10 = arith.constant 0 : index
    %30 = vector.load %arg4[%c0_9, %c0_10] : memref<8x1xf32, #tpu.memory_space<vmem>>, vector<8x1xf32>
    tpu.vector_store %arg4[%c0_9, %c0_10], %29 {strides = array<i32>} : memref<8x1xf32, #tpu.memory_space<vmem>>, vector<8x1xf32>,
    return
  }
  func.func @transform_0(%arg0: i32) -> (i32, i32) {
    %c0_i32 = arith.constant 0 : i32
    %c0_i32_0 = arith.constant 0 : i32
    return %arg0, %c0_i32 : i32, i32
  }
  func.func @transform_1(%arg0: i32) -> (i32, i32) {
    %c0_i32 = arith.constant 0 : i32
    %c0_i32_0 = arith.constant 0 : i32
    %c0_i32_1 = arith.constant 0 : i32
    return %c0_i32, %c0_i32_0 : i32, i32
  }
  func.func @transform_2(%arg0: i32) -> (i32, i32) {
    %c0_i32 = arith.constant 0 : i32
    %c0_i32_0 = arith.constant 0 : i32
    return %arg0, %c0_i32 : i32, i32
  }
  func.func @transform_3(%arg0: i32) -> (i32, i32) {
    %c0_i32 = arith.constant 0 : i32
    %c0_i32_0 = arith.constant 0 : i32
    return %arg0, %c0_i32 : i32, i32
  }
}

</mosaic_0001>

<llo_original>
// kernel: tpu_custom_call.1
$region0: #{tpu_custom_call.1}
  #allocation0 [shape = 'u32[]', space=smem, size = 0x4, offset = 0x4, fixed_abs, tag = 'smem constant byte address 0x4 - core index']
  #allocation1 [shape = 'u32[144,128]{1,0:T(1,128)}', space=vmem, size = 0x12000, scoped, tag = 'internal scratch']
  %s0 = inlined_call_operand.vmem [shape: s32[16,2], index: 0, kind: input, shape index: {}]
  %s1 = inlined_call_operand.hbm [shape: f32[128,128], index: 1, kind: input, shape index: {}]
  %s2 = inlined_call_operand.hbm [shape: f32[16,65], index: 2, kind: output, shape index: {0}]
  %s3 = inlined_call_operand.vmem [shape: f32[16,1], index: 3, kind: output, shape index: {1}]
  %4 = xla_tuple %s2, %s3
  %s5 = sld [smem:[#allocation0]]
  $region53: #{tpu_custom_call.1} parent=0
    _
  %s7 = ssub.s32 1, %s5
  %s8 = scalar_select 0, %s7, %s5
  $region1: #{tpu_custom_call.1} parent=0
    #allocation2 [shape = 'u8[65536]{0}', space=vmem, size = 0x10000, scoped, tag = 'input window, operand 1, single buffered']
    #allocation3 [shape = 's32[2]{0}', space=sflag, size = 0x8, scoped, tag = 'scoped memory for tpu_custom_call.1']
    #allocation4 [shape = 's32[2]{0}', space=sflag, size = 0x8, scoped, tag = 'scoped memory for tpu_custom_call.1']
    #allocation5 [shape = 'u8[8192]{0}', space=vmem, size = 0x2000, scoped, tag = 'output window, operand 0']
    %9 = vsyncpa [#allocation3], 0
    %10 = vsyncpa [#allocation4], 0
    %s11 = scalar_lea.sflag [#allocation4], 1
    %12 = vsyncpa %s11, 0
    loop: start=0, step=1, limit=4
    $region2: #{tpu_custom_call.1} parent=1 // loop_pre_header
      _
    $region3: #{tpu_custom_call.1} parent=1 // loop_header
      %s14 = sphi 0, %s18
      %p15 = scmp.ge.s32.totalorder %s14, 4
      %s24 = sphi 0, %s26
      %s27 = sphi 0, %s24
      %s28 = sphi 0, %s27
      %s44 = sphi 0, %s28
      %s48 = sphi 0, %s48
      %s50 = sphi 0, %s48
      %s51 = sphi 0, %s50
      %s65 = sphi 0, %s51
      %s71 = sphi 0, %s73
      %s74 = sphi 0, %s71
      %s75 = sphi 0, %s74
      %s91 = sphi 0, %s75
      %s97 = sphi 0, %s99
      %s100 = sphi 0, %s97
      %s101 = sphi 0, %s100
      %s117 = sphi 0, %s101
    $region4: #{tpu_custom_call.1} parent=1 // loop_header_branch
      %17 = sbr.rel (%p15) target = $region8
    $region5: #{tpu_custom_call.1} parent=1 // loop_body
      %s19 = ssub.s32 %s14, 1
      %s20 = ssub.s32 %s14, 2
      %s21 = sadd.s32 %s14, 1
      %s22 = ssub.s32 %s14, %s21
      %p23 = scmp.eq.s32.totalorder %s22, 0
      %s25 = sadd.s32 %s24, 1
      %s26 = scalar_select %p23, %s24, %s25
      %p29 = pneg %p23
      %p30 = scmp.eq.s32.totalorder %s14, 1
      %p31 = por %p29, %p30
      %p32 = scmp.ne.s32.totalorder %s24, %s27
      %p33 = scmp.eq.s32.totalorder %s14, 0
      %p34 = por %p32, %p33
      %p35 = scmp.ne.s32.totalorder %s24, %s27
      %p36 = scmp.eq.s32.totalorder %s19, 1
      %p37 = por %p35, %p36
      %p38 = scmp.ne.s32.totalorder %s27, %s28
      %p39 = scmp.eq.s32.totalorder %s19, 0
      %p40 = por %p38, %p39
      %p41 = scmp.ne.s32.totalorder %s27, %s28
      %p42 = scmp.eq.s32.totalorder %s20, 1
      %p43 = por %p41, %p42
      %p45 = scmp.ne.s32.totalorder %s28, %s44
      %p46 = scmp.eq.s32.totalorder %s20, 0
      %p47 = por %p45, %p46
      %s49 = sadd.s32 %s48, 1
      %p52 = scmp.eq.s32.totalorder %s14, 1
      %p53 = scmp.ne.s32.totalorder %s48, %s50
      %p54 = scmp.eq.s32.totalorder %s14, 0
      %p55 = por %p53, %p54
      %p56 = scmp.ne.s32.totalorder %s48, %s50
      %p57 = scmp.eq.s32.totalorder %s19, 1
      %p58 = por %p56, %p57
      %p59 = scmp.ne.s32.totalorder %s50, %s51
      %p60 = scmp.eq.s32.totalorder %s19, 0
      %p61 = por %p59, %p60
      %p62 = scmp.ne.s32.totalorder %s50, %s51
      %p63 = scmp.eq.s32.totalorder %s20, 1
      %p64 = por %p62, %p63
      %p66 = scmp.ne.s32.totalorder %s51, %s65
      %p67 = scmp.eq.s32.totalorder %s20, 0
      %p68 = por %p66, %p67
      %s69 = ssub.s32 %s14, %s21
      %p70 = scmp.eq.s32.totalorder %s69, 0
      %s72 = sadd.s32 %s71, 1
      %s73 = scalar_select %p70, %s71, %s72
      %p76 = pneg %p70
      %p77 = scmp.eq.s32.totalorder %s14, 1
      %p78 = por %p76, %p77
      %p79 = scmp.ne.s32.totalorder %s71, %s74
      %p80 = scmp.eq.s32.totalorder %s14, 0
      %p81 = por %p79, %p80
      %p82 = scmp.ne.s32.totalorder %s71, %s74
      %p83 = scmp.eq.s32.totalorder %s19, 1
      %p84 = por %p82, %p83
      %p85 = scmp.ne.s32.totalorder %s74, %s75
      %p86 = scmp.eq.s32.totalorder %s19, 0
      %p87 = por %p85, %p86
      %p88 = scmp.ne.s32.totalorder %s74, %s75
      %p89 = scmp.eq.s32.totalorder %s20, 1
      %p90 = por %p88, %p89
      %p92 = scmp.ne.s32.totalorder %s75, %s91
      %p93 = scmp.eq.s32.totalorder %s20, 0
      %p94 = por %p92, %p93
      %s95 = ssub.s32 %s14, %s21
      %p96 = scmp.eq.s32.totalorder %s95, 0
      %s98 = sadd.s32 %s97, 1
      %s99 = scalar_select %p96, %s97, %s98
      %p102 = pneg %p96
      %p103 = scmp.eq.s32.totalorder %s14, 1
      %p104 = por %p102, %p103
      %p105 = scmp.ne.s32.totalorder %s97, %s100
      %p106 = scmp.eq.s32.totalorder %s14, 0
      %p107 = por %p105, %p106
      %p108 = scmp.ne.s32.totalorder %s97, %s100
      %p109 = scmp.eq.s32.totalorder %s19, 1
      %p110 = por %p108, %p109
      %p111 = scmp.ne.s32.totalorder %s100, %s101
      %p112 = scmp.eq.s32.totalorder %s19, 0
      %p113 = por %p111, %p112
      %p114 = scmp.ne.s32.totalorder %s100, %s101
      %p115 = scmp.eq.s32.totalorder %s20, 1
      %p116 = por %p114, %p115
      %p118 = scmp.ne.s32.totalorder %s101, %s117
      %p119 = scmp.eq.s32.totalorder %s20, 0
      %p120 = por %p118, %p119
      %p121 = scmp.le.s32.totalorder 1, %s14
      %p122 = scmp.lt.s32.totalorder %s14, 3
      %p123 = pnand %p121, %p122
      %p124 = pneg %p123
      // Predicated region
      $region9: #{tpu_custom_call.1} parent=5 // pred_check
        _
      $region10: #{tpu_custom_call.1} parent=5 // pred_check_branch
        %126 = sbr.rel (%p123) target = $region12
      $region11: #{tpu_custom_call.1} parent=5 // pred_region
        %s127 = ssub.s32 %s14, 1
        // Predicated region
        $region13: #{tpu_custom_call.1} parent=11 // pred_check
          %p128 = pneg %p61
        $region14: #{tpu_custom_call.1} parent=11 // pred_check_branch
          %130 = sbr.rel (%p128) target = $region16
        $region15: #{tpu_custom_call.1} parent=11 // pred_region
          %s132 = ssub.s32 2048, 2048
          %133 = vsyncadd [#allocation3], %s132
          %s134 = sshll.u32 [#allocation2], 4
          %s135 = int_to_ptr.vmem [resolvable:$true] %s134
          %140 = dma.hbm_to_vmem [thread:$0]  %s1, 2048, %s135, [#allocation3], 128, 128, 8
        $region16: #{tpu_custom_call.1} parent=11 // pred_fallthru
          _
      $region12: #{tpu_custom_call.1} parent=5 // pred_fallthru
        _
      %p141 = scmp.lt.s32.totalorder %s14, 2
      // Predicated region
      $region17: #{tpu_custom_call.1} parent=5 // pred_check
        %p142 = pneg %p141
      $region18: #{tpu_custom_call.1} parent=5 // pred_check_branch
        %144 = sbr.rel (%p142) target = $region20
      $region19: #{tpu_custom_call.1} parent=5 // pred_region
        // Predicated region
        $region21: #{tpu_custom_call.1} parent=19 // pred_check
          %p145 = pneg %p34
        $region22: #{tpu_custom_call.1} parent=19 // pred_check_branch
          %147 = sbr.rel (%p145) target = $region24
        $region23: #{tpu_custom_call.1} parent=19 // pred_region
          %p148 = scmp.lt.s32.totalorder %s14, 1
          %s149 = scalar_select %p148, %s14, 1
          %s150 = smul.addr %s149, 8
          %s151 = scalar_lea.vmem %s0, %s150
        $region24: #{tpu_custom_call.1} parent=19 // pred_fallthru
          _
      $region20: #{tpu_custom_call.1} parent=5 // pred_fallthru
        _
      %p152 = scmp.le.s32.totalorder 1, %s14
      %p153 = scmp.lt.s32.totalorder %s14, 3
      %p154 = pnand %p152, %p153
      %p155 = pneg %p154
      // Predicated region
      $region25: #{tpu_custom_call.1} parent=5 // pred_check
        _
      $region26: #{tpu_custom_call.1} parent=5 // pred_check_branch
        %157 = sbr.rel (%p154) target = $region28
      $region27: #{tpu_custom_call.1} parent=5 // pred_region
        %s158 = ssub.s32 %s14, 1
        // Predicated region
        $region29: #{tpu_custom_call.1} parent=27 // pred_check
          %p159 = pneg %p61
        $region30: #{tpu_custom_call.1} parent=27 // pred_check_branch
          %161 = sbr.rel (%p159) target = $region32
        $region31: #{tpu_custom_call.1} parent=27 // pred_region
          %162 = dma.done [#allocation3], 2048
        $region32: #{tpu_custom_call.1} parent=27 // pred_fallthru
          _
        %p163 = scmp.lt.s32.totalorder %s19, 1
        %s164 = scalar_select %p163, %s19, 1
        %s165 = smul.addr %s164, 8
        %s166 = scalar_lea.vmem %s0, %s165
        %p167 = pneg %p40
        %p168 = pneg %p37
        %p169 = pneg %p61
        %p170 = pneg %p58
        %p171 = pneg %p87
        %p172 = pneg %p84
        %s173 = sand.u32 %s74, 1
        %s174 = scalar_lea.sflag [#allocation4], %s173
        %s175 = sand.u32 %s74, 1
        %s176 = smul.addr %s175, 8
        %s177 = scalar_lea.vmem [#allocation5], %s176
        %p178 = pneg %p113
        %p179 = pneg %p110
        %p180 = scmp.lt.s32.totalorder %s19, 1
        %s181 = scalar_select %p180, %s19, 1
        %s182 = smul.addr %s181, 8
        %s183 = scalar_lea.vmem %s3, %s182
        %p184 = scmp.lt.s32.totalorder %s19, 1
        %s185 = scalar_select %p184, %s19, 1
        %s186 = smul.addr %s185, 8
        %s187 = scalar_lea.vmem %s0, %s186
        %p188 = scmp.lt.s32.totalorder %s19, 1
        %s189 = scalar_select %p188, %s19, 1
        %s190 = smul.addr %s189, 8
        %s191 = scalar_lea.vmem %s3, %s190
        %v192 = vld [vmem:[%s187] sm:$0xff]
        %v193 = vld [vmem:[#allocation2] sm:$0xff]
        %v194 = vld [vmem:[#allocation2 + $0x8] sm:$0xff]
        %v195 = vld [vmem:[#allocation2 + $0x10] sm:$0xff]
        %v196 = vld [vmem:[#allocation2 + $0x18] sm:$0xff]
        %v197 = vld [vmem:[#allocation2 + $0x20] sm:$0xff]
        %v198 = vld [vmem:[#allocation2 + $0x28] sm:$0xff]
        %v199 = vld [vmem:[#allocation2 + $0x30] sm:$0xff]
        %v200 = vld [vmem:[#allocation2 + $0x38] sm:$0xff]
        %v201 = vld [vmem:[#allocation2 + $0x40] sm:$0xff]
        %v202 = vld [vmem:[#allocation2 + $0x48] sm:$0xff]
        %v203 = vld [vmem:[#allocation2 + $0x50] sm:$0xff]
        %v204 = vld [vmem:[#allocation2 + $0x58] sm:$0xff]
        %v205 = vld [vmem:[#allocation2 + $0x60] sm:$0xff]
        %v206 = vld [vmem:[#allocation2 + $0x68] sm:$0xff]
        %v207 = vld [vmem:[#allocation2 + $0x70] sm:$0xff]
        %v208 = vld [vmem:[#allocation2 + $0x78] sm:$0xff]
        %v209 = vlaneseq
        %v210 = vand.u32 %v209, 127
        %211 = vset.pattern.permute.xlu0 0
        %212 = vperm.xlu0 %211, %v192
        %v213 = vpop.permute.xlu0 %212
        %vm214 = vcmp.eq.s32.totalorder %v210, %v213
        %v215 = vsel %vm214, 1, 0
        %v216 = vcvt.s32.f32 %v215
        %217 = vmatprep.subr.mxu0 0.0
        %218 = vmatpush1.msra.mxu0 %v193
        %219 = vmatprep.subr.mxu0 0.0
        %220 = vmatpush1.msra.mxu0 %v194
        %221 = vmatprep.subr.mxu0 0.0
        %222 = vmatpush1.msra.mxu0 %v195
        %223 = vmatprep.subr.mxu0 0.0
        %224 = vmatpush1.msra.mxu0 %v196
        %225 = vmatprep.subr.mxu0 0.0
        %226 = vmatpush1.msra.mxu0 %v197
        %227 = vmatprep.subr.mxu0 0.0
        %228 = vmatpush1.msra.mxu0 %v198
        %229 = vmatprep.subr.mxu0 0.0
        %230 = vmatpush1.msra.mxu0 %v199
        %231 = vmatprep.subr.mxu0 0.0
        %232 = vmatpush1.msra.mxu0 %v200
        %233 = vmatprep.subr.mxu0 0.0
        %234 = vmatpush1.msra.mxu0 %v201
        %235 = vmatprep.subr.mxu0 0.0
        %236 = vmatpush1.msra.mxu0 %v202
        %237 = vmatprep.subr.mxu0 0.0
        %238 = vmatpush1.msra.mxu0 %v203
        %239 = vmatprep.subr.mxu0 0.0
        %240 = vmatpush1.msra.mxu0 %v204
        %241 = vmatprep.subr.mxu0 0.0
        %242 = vmatpush1.msra.mxu0 %v205
        %243 = vmatprep.subr.mxu0 0.0
        %244 = vmatpush1.msra.mxu0 %v206
        %245 = vmatprep.subr.mxu0 0.0
        %246 = vmatpush1.msra.mxu0 %v207
        %247 = vmatprep.subr.mxu0 0.0
        %248 = vmatpush1.msra.mxu0 %v208
        %249 = vmatprep.subr.mxu0 0.0
        %250 = vmatpush1.msra.mxu0 0.0
        %251 = vmatprep.subr.mxu0 0.0
        %252 = vmatpush1.msra.mxu0 0.0
        %253 = vmatprep.subr.mxu0 0.0
        %254 = vmatpush1.msra.mxu0 0.0
        %255 = vmatprep.subr.mxu0 0.0
        %256 = vmatpush1.msra.mxu0 0.0
        %257 = vmatprep.subr.mxu0 0.0
        %258 = vmatpush1.msra.mxu0 0.0
        %259 = vmatprep.subr.mxu0 0.0
        %260 = vmatpush1.msra.mxu0 0.0
        %261 = vmatprep.subr.mxu0 0.0
        %262 = vmatpush1.msra.mxu0 0.0
        %263 = vmatprep.subr.mxu0 0.0
        %264 = vmatpush1.msra.mxu0 0.0
        %265 = vmatprep.subr.mxu0 0.0
        %266 = vmatpush1.msra.mxu0 0.0
        %267 = vmatprep.subr.mxu0 0.0
        %268 = vmatpush1.msra.mxu0 0.0
        %269 = vmatprep.subr.mxu0 0.0
        %270 = vmatpush1.msra.mxu0 0.0
        %271 = vmatprep.subr.mxu0 0.0
        %272 = vmatpush1.msra.mxu0 0.0
        %273 = vmatprep.subr.mxu0 0.0
        %274 = vmatpush1.msra.mxu0 0.0
        %275 = vmatprep.subr.mxu0 0.0
        %276 = vmatpush1.msra.mxu0 0.0
        %277 = vmatprep.subr.mxu0 0.0
        %278 = vmatpush1.msra.mxu0 0.0
        %279 = vmatprep.subr.mxu0 0.0
        %280 = vmatpush1.msra.mxu0 0.0
        %281 = vmatprep.mubr.f32.mxu0 0.0
        %282 = vmatmul.mubr.f32.gmra.mrb[0].mxu0 %v216
        %v283 = vpop.f32.mrb[0].mxu0
        %v284 = vadd.f32 0.0, %v283
        %v285 = vpop.f32.mrb[0].mxu0
        %286 = vdwg.mxu0
        %vm287 = vcmask 531456
        %288 = vst.msk [vmem:[%s177] sm:$0xff] %vm287, %v284
        %289 = vmax.xlane.f32.xlu0 %v284
        %v290 = vpop.xlane.xlu0 %289
        %v291 = vsub.f32 %v284, %v290
        %v292 = vmul.f32 %v291, 1.442695
        %v293 = vpow.pop %v292
        %294 = vadd.xlane.f32.xlu0 %v293
        %v295 = vpop.xlane.xlu0 %294
        %v296 = vlog2.pop %v295
        %v297 = vmul.f32 %v296, 0.6931472
        %v298 = vadd.f32 %v290, %v297
        %299 = vset.pattern.permute.xlu0 1
        %300 = vperm.xlu0 %299, %v192
        %v301 = vpop.permute.xlu0 %300
        %vm302 = vcmp.eq.s32.totalorder %v210, %v301
        %v303 = vsel %vm302, %v284, 0.0
        %304 = vadd.xlane.f32.xlu0 %v303
        %v305 = vpop.xlane.xlu0 %304
        %v306 = vsub.f32 %v298, %v305
        %vm307 = vcmask 7168
        %308 = vst.msk [vmem:[%s191] sm:$0xff] %vm307, %v306
        %s309 = sand.u32 %s74, 1
        %s310 = scalar_lea.sflag [#allocation4], %s309
        %s311 = sand.u32 %s74, 1
        %s312 = smul.addr %s311, 8
        %s313 = scalar_lea.vmem [#allocation5], %s312
        %p314 = scmp.lt.s32.totalorder %s19, 1
        %s315 = scalar_select %p314, %s19, 1
        %s316 = smul.addr %s315, 8
        %s317 = scalar_lea.vmem %s3, %s316
        // Predicated region
        $region33: #{tpu_custom_call.1} parent=27 // pred_check
          %p318 = pneg %p84
        $region34: #{tpu_custom_call.1} parent=27 // pred_check_branch
          %320 = sbr.rel (%p318) target = $region36
        $region35: #{tpu_custom_call.1} parent=27 // pred_region
          %s322 = ssub.s32 128, 128
          %323 = vsyncadd %s310, %s322
          %s324 = smul.addr %s19, 128
          %s325 = scalar_lea.hbm %s2, %s324
          %s327 = sshll.u32 %s313, 4
          %s328 = int_to_ptr.vmem [resolvable:$true] %s327
          %330 = dma.vmem_to_hbm [thread:$0]  %s328, 128, %s325, %s310
        $region36: #{tpu_custom_call.1} parent=27 // pred_fallthru
          _
        // Predicated region
        $region37: #{tpu_custom_call.1} parent=27 // pred_check
          %p331 = pneg %p110
        $region38: #{tpu_custom_call.1} parent=27 // pred_check_branch
          %333 = sbr.rel (%p331) target = $region40
        $region39: #{tpu_custom_call.1} parent=27 // pred_region
          _
        $region40: #{tpu_custom_call.1} parent=27 // pred_fallthru
          _
      $region28: #{tpu_custom_call.1} parent=5 // pred_fallthru
        _
      %p334 = scmp.le.s32.totalorder 2, %s14
      // Predicated region
      $region41: #{tpu_custom_call.1} parent=5 // pred_check
        %p335 = pneg %p334
      $region42: #{tpu_custom_call.1} parent=5 // pred_check_branch
        %337 = sbr.rel (%p335) target = $region44
      $region43: #{tpu_custom_call.1} parent=5 // pred_region
        %s338 = ssub.s32 %s14, 2
        // Predicated region
        $region45: #{tpu_custom_call.1} parent=43 // pred_check
          %p339 = pneg %p90
        $region46: #{tpu_custom_call.1} parent=43 // pred_check_branch
          %341 = sbr.rel (%p339) target = $region48
        $region47: #{tpu_custom_call.1} parent=43 // pred_region
          %s342 = sand.u32 %s75, 1
          %s343 = scalar_lea.sflag [#allocation4], %s342
          %s344 = sand.u32 %s75, 1
          %s345 = smul.addr %s344, 8
          %s346 = scalar_lea.vmem [#allocation5], %s345
          %347 = dma.done %s343, 128
        $region48: #{tpu_custom_call.1} parent=43 // pred_fallthru
          _
        // Predicated region
        $region49: #{tpu_custom_call.1} parent=43 // pred_check
          %p348 = pneg %p116
        $region50: #{tpu_custom_call.1} parent=43 // pred_check_branch
          %350 = sbr.rel (%p348) target = $region52
        $region51: #{tpu_custom_call.1} parent=43 // pred_region
          %p351 = scmp.lt.s32.totalorder %s20, 1
          %s352 = scalar_select %p351, %s20, 1
          %s353 = smul.addr %s352, 8
          %s354 = scalar_lea.vmem %s3, %s353
        $region52: #{tpu_custom_call.1} parent=43 // pred_fallthru
          _
      $region44: #{tpu_custom_call.1} parent=5 // pred_fallthru
        _
    $region6: #{tpu_custom_call.1} parent=1 // loop_footer
      %s18 = sadd.s32 1, %s14
    $region7: #{tpu_custom_call.1} parent=1 // loop_footer_branch
      %13 = sbr.rel target = $region3
    $region8: #{tpu_custom_call.1} parent=1 // loop_exit
      _
    %355 = vsyncpa [#allocation3], 1
    %s356 = scalar_lea.sflag [#allocation3], 1
    %357 = vsyncpa %s356, 1
    %358 = vsyncpa [#allocation4], 1
    %s359 = scalar_lea.sflag [#allocation4], 1
    %360 = vsyncpa %s359, 1

</llo_original>
